<compile_context>
chip_gen: v7x
topology: tpu7x:2x2x1
jax: 0.10.0
libtpu: 0.0.40
codegen_flags: <defaults>
</compile_context>

<pallas_src>
import jax
import jax.numpy as jnp
from jax.experimental import pallas as pl
from jax.experimental.pallas import tpu as pltpu


def _make_kernel(ignore_index: int, hw: int, tile_hw: int):
    def kernel(preds_ref, labels_ref, sum_ref, cnt_ref):
        j = pl.program_id(1)

        logits = preds_ref[...].astype(jnp.float32)       # (C, T): classes on sublanes
        labels = labels_ref[...]                          # (1, T) int32
        C, T = logits.shape

        # numerically stable log-sum-exp over the class (sublane) axis
        m = jnp.max(logits, axis=0, keepdims=True)                             # (1, T)
        lse = jnp.log(jnp.sum(jnp.exp(logits - m), axis=0, keepdims=True)) + m  # (1, T)

        # gather the label logit with a one-hot select (VPU/XLU only, no MXU)
        cls = jax.lax.broadcasted_iota(jnp.int32, (C, T), 0)
        logit_y = jnp.sum(jnp.where(cls == labels, logits, 0.0),
                          axis=0, keepdims=True)                               # (1, T)

        # mask ignore_index pixels and the out-of-bounds tail of a ragged last tile
        col = jax.lax.broadcasted_iota(jnp.int32, (1, T), 1) + j * tile_hw
        valid = (labels != ignore_index) & (col < hw)                          # (1, T)

        ce = jnp.where(valid, lse - logit_y, 0.0)                              # (1, T)

        # per-tile partials; final reduction happens in the JAX wrapper
        sum_ref[...] = jnp.sum(ce, keepdims=True)                              # (1, 1) f32
        cnt_ref[...] = jnp.sum(valid.astype(jnp.int32), keepdims=True)         # (1, 1) i32

    return kernel


def _choose_tile_hw(C, hw, itemsize, vmem_budget_bytes=8 * 1024 * 1024,
                    max_tile=8192):
    """Largest multiple-of-128 spatial tile whose double-buffered preds stream
    fits a conservative (v7x-safe) VMEM budget."""
    lanes = vmem_budget_bytes // (2 * C * itemsize)
    lanes = max(128, (lanes // 128) * 128)
    tile = int(min(lanes, max_tile))
    if hw <= tile:
        return hw          # block spans the full spatial axis (always legal)
    return tile            # multiple of 128; ragged tail is masked in-kernel


def mfocal_loss(preds, labels, *, alpha=0.5, gamma=2.0, ignore_index=255,
                tile_hw=None):
    """Focal loss over mean-reduced cross entropy (mirrors torch MFocalLoss.forward).

    preds:  [N, C, H, W] float logits (f32 or bf16).
    labels: [N, H, W] integer class ids; entries equal to ignore_index are skipped.
    Returns a scalar float32.
    """
    # TODO(synk): per-class `weight` of CrossEntropyLoss is not supported (module default is None).
    N, C, H, W = preds.shape
    HW = H * W

    preds3d = preds.reshape(N, C, HW)                     # free view, stays NCHW
    labels3d = labels.reshape(N, 1, HW).astype(jnp.int32)

    if tile_hw is None:
        tile_hw = _choose_tile_hw(C, HW, jnp.dtype(preds.dtype).itemsize)
    tile_hw = int(tile_hw)
    nj = (HW + tile_hw - 1) // tile_hw

    kernel = _make_kernel(int(ignore_index), int(HW), tile_hw)

    sums, cnts = pl.pallas_call(
        kernel,
        out_shape=(
            jax.ShapeDtypeStruct((N, nj, 1, 1), jnp.float32),   # per-tile CE sums
            jax.ShapeDtypeStruct((N, nj, 1, 1), jnp.int32),     # per-tile valid counts
        ),
        grid_spec=pltpu.PrefetchScalarGridSpec(
            num_scalar_prefetch=0,
            grid=(N, nj),
            in_specs=[
                # preds tile: classes on sublanes, spatial on lanes
                pl.BlockSpec((None, C, tile_hw), lambda n, j: (n, 0, j)),
                # labels tile
                pl.BlockSpec((None, 1, tile_hw), lambda n, j: (n, 0, j)),
            ],
            out_specs=[
                pl.BlockSpec((None, None, 1, 1), lambda n, j: (n, j, 0, 0)),
                pl.BlockSpec((None, None, 1, 1), lambda n, j: (n, j, 0, 0)),
            ],
        ),
        compiler_params=pltpu.CompilerParams(
            dimension_semantics=("parallel", "parallel"),
            vmem_limit_bytes=32 * 1024 * 1024,
        ),
    )(preds3d, labels3d)

    # mean CE over valid pixels, then the focal transform (tiny scalar work)
    ce = jnp.sum(sums) / jnp.sum(cnts).astype(jnp.float32)
    logpt = -ce
    pt = jnp.exp(logpt)
    return -((1.0 - pt) ** float(gamma)) * float(alpha) * logpt


def _reference(preds, labels, *, alpha=0.5, gamma=2.0, ignore_index=255):
    """Pure-JAX reference mirroring torch CrossEntropyLoss(mean, ignore_index) + focal."""
    N, C, H, W = preds.shape
    p = jnp.transpose(preds, (0, 2, 3, 1)).reshape(-1, C).astype(jnp.float32)
    y = labels.reshape(-1)
    logz = jax.nn.logsumexp(p, axis=-1)
    y_safe = jnp.where(y == ignore_index, 0, y)
    logit_y = jnp.take_along_axis(p, y_safe[:, None], axis=-1)[:, 0]
    valid = (y != ignore_index).astype(jnp.float32)
    ce = jnp.sum((logz - logit_y) * valid) / jnp.sum(valid)
    logpt = -ce
    pt = jnp.exp(logpt)
    return -((1.0 - pt) ** gamma) * alpha * logpt


if __name__ == "__main__":
    key = jax.random.PRNGKey(0)
    k1, k2, k3 = jax.random.split(key, 3)

    # primary shape consistent with the module (NCHW logits, integer labels)
    N, C, H, W = 2, 4, 16, 16
    preds = jax.random.normal(k1, (N, C, H, W), dtype=jnp.float32)
    labels = jax.random.randint(k2, (N, H, W), 0, C, dtype=jnp.int32)
    ignore_mask = jax.random.uniform(k3, (N, H, W)) < 0.1
    labels = jnp.where(ignore_mask, 255, labels)

    loss = mfocal_loss(preds, labels, alpha=0.5, gamma=2.0, ignore_index=255)
    loss = jax.block_until_ready(loss)
    ref = _reference(preds, labels, alpha=0.5, gamma=2.0, ignore_index=255)
    assert jnp.allclose(loss, ref, rtol=1e-5, atol=1e-6), (loss, ref)

    # second shape exercising the ragged-last-tile masking path (HW=300, tile=128)
    k4, k5, k6 = jax.random.split(jax.random.PRNGKey(1), 3)
    N2, C2, H2, W2 = 2, 4, 15, 20
    preds2 = jax.random.normal(k4, (N2, C2, H2, W2), dtype=jnp.float32)
    labels2 = jax.random.randint(k5, (N2, H2, W2), 0, C2, dtype=jnp.int32)
    labels2 = jnp.where(jax.random.uniform(k6, (N2, H2, W2)) < 0.1, 255, labels2)

    loss2 = jax.block_until_ready(mfocal_loss(preds2, labels2, tile_hw=128))
    ref2 = _reference(preds2, labels2)
    assert jnp.allclose(loss2, ref2, rtol=1e-5, atol=1e-6), (loss2, ref2)

    print("KERNEL_OK")
</pallas_src>

<mosaic_0001>
module attributes {stable_mosaic.version = 11 : i64} {
  func.func @kernel(%arg0: i32, %arg1: i32, %arg2: memref<1x4x256xf32, #tpu.memory_space<vmem>>, %arg3: memref<1x1x256xi32, #tpu.memory_space<vmem>>, %arg4: memref<1x1x1x1xf32, #tpu.memory_space<vmem>>, %arg5: memref<1x1x1x1xi32, #tpu.memory_space<vmem>>) attributes {dimension_semantics = [#tpu.dimension_semantics<parallel>, #tpu.dimension_semantics<parallel>], iteration_bounds = array<i64: 2, 1>, scalar_prefetch = 0 : i64, scratch_operands = 0 : i64, tpu.core_type = #tpu.core_type<tc>, window_params = [{transform_indices = @transform_0, window_bounds = array<i64: 1, 4, 256>}, {transform_indices = @transform_1, window_bounds = array<i64: 1, 1, 256>}, {transform_indices = @transform_2, window_bounds = array<i64: 1, 1, 1, 1>}, {transform_indices = @transform_3, window_bounds = array<i64: 1, 1, 1, 1>}]} {
    %c0 = arith.constant 0 : index
    %c0_0 = arith.constant 0 : index
    %c0_1 = arith.constant 0 : index
    %0 = vector.load %arg2[%c0, %c0_0, %c0_1] : memref<1x4x256xf32, #tpu.memory_space<vmem>>, vector<1x4x256xf32>
    %1 = vector.shape_cast %0 : vector<1x4x256xf32> to vector<4x256xf32>
    %c0_2 = arith.constant 0 : index
    %c0_3 = arith.constant 0 : index
    %c0_4 = arith.constant 0 : index
    %2 = vector.load %arg3[%c0_2, %c0_3, %c0_4] : memref<1x1x256xi32, #tpu.memory_space<vmem>>, vector<1x1x256xi32>
    %3 = vector.shape_cast %2 : vector<1x1x256xi32> to vector<1x256xi32>
    %cst = arith.constant dense<0xFF800000> : vector<256xf32>
    %4 = vector.multi_reduction <maximumf>, %1, %cst [0] : vector<4x256xf32> to vector<256xf32>
    %5 = vector.shape_cast %4 : vector<256xf32> to vector<1x256xf32>
    %6 = vector.broadcast %5 : vector<1x256xf32> to vector<4x256xf32>
    %7 = arith.subf %1, %6 : vector<4x256xf32>
    %8 = math.exp %7 : vector<4x256xf32>
    %cst_5 = arith.constant dense<0.000000e+00> : vector<256xf32>
    %9 = vector.multi_reduction <add>, %8, %cst_5 [0] : vector<4x256xf32> to vector<256xf32>
    %10 = vector.shape_cast %9 : vector<256xf32> to vector<1x256xf32>
    %11 = math.log %10 : vector<1x256xf32>
    %12 = arith.addf %11, %5 : vector<1x256xf32>
    %13 = tpu.iota {dimensions = array<i32: 0>} : vector<4x256xi32>
    %14 = vector.broadcast %3 : vector<1x256xi32> to vector<4x256xi32>
    %15 = arith.cmpi eq, %13, %14 : vector<4x256xi32>
    %cst_6 = arith.constant 0.000000e+00 : f32
    %16 = vector.broadcast %cst_6 : f32 to vector<4x256xf32>
    %17 = arith.select %15, %1, %16 : vector<4x256xi1>, vector<4x256xf32>
    %cst_7 = arith.constant dense<0.000000e+00> : vector<256xf32>
    %18 = vector.multi_reduction <add>, %17, %cst_7 [0] : vector<4x256xf32> to vector<256xf32>
    %19 = vector.shape_cast %18 : vector<256xf32> to vector<1x256xf32>
    %20 = tpu.iota {dimensions = array<i32: 1>} : vector<1x256xi32>
    %c256_i32 = arith.constant 256 : i32
    %21 = arith.muli %arg1, %c256_i32 : i32
    %22 = vector.broadcast %21 : i32 to vector<1x256xi32>
    %23 = arith.addi %20, %22 : vector<1x256xi32>
    %c255_i32 = arith.constant 255 : i32
    %24 = vector.broadcast %c255_i32 : i32 to vector<1x256xi32>
    %25 = arith.cmpi ne, %3, %24 : vector<1x256xi32>
    %c256_i32_8 = arith.constant 256 : i32
    %26 = vector.broadcast %c256_i32_8 : i32 to vector<1x256xi32>
    %27 = arith.cmpi slt, %23, %26 : vector<1x256xi32>
    %28 = arith.andi %25, %27 : vector<1x256xi1>
    %29 = arith.subf %12, %19 : vector<1x256xf32>
    %cst_9 = arith.constant 0.000000e+00 : f32
    %30 = vector.broadcast %cst_9 : f32 to vector<1x256xf32>
    %31 = arith.select %28, %29, %30 : vector<1x256xi1>, vector<1x256xf32>
    %32 = vector.shape_cast %31 : vector<1x256xf32> to vector<1x1x256xf32>
    %cst_10 = arith.constant dense<0.000000e+00> : vector<1xf32>
    %33 = vector.multi_reduction <add>, %32, %cst_10 [1, 2] : vector<1x1x256xf32> to vector<1xf32>
    %34 = vector.shape_cast %33 : vector<1xf32> to vector<1x1x1xf32>
    %35 = vector.extract %34[0, 0, 0] : f32 from vector<1x1x1xf32>
    %36 = vector.broadcast %35 : f32 to vector<1x1xf32>
    %c0_11 = arith.constant 0 : index
    %c0_12 = arith.constant 0 : index
    %c0_13 = arith.constant 0 : index
    %c0_14 = arith.constant 0 : index
    %37 = vector.load %arg4[%c0_11, %c0_12, %c0_13, %c0_14] : memref<1x1x1x1xf32, #tpu.memory_space<vmem>>, vector<1x1x1x1xf32>
    %38 = vector.shape_cast %37 : vector<1x1x1x1xf32> to vector<1x1xf32>
    %39 = vector.shape_cast %36 : vector<1x1xf32> to vector<1x1x1x1xf32>
    tpu.vector_store %arg4[%c0_11, %c0_12, %c0_13, %c0_14], %39 {strides = array<i32>} : memref<1x1x1x1xf32, #tpu.memory_space<vmem>>, vector<1x1x1x1xf32>,
    %40 = arith.extui %28 : vector<1x256xi1> to vector<1x256xi32>
    %41 = vector.shape_cast %40 : vector<1x256xi32> to vector<1x1x256xi32>
    %cst_15 = arith.constant dense<0> : vector<1xi32>
    %42 = vector.multi_reduction <add>, %41, %cst_15 [1, 2] : vector<1x1x256xi32> to vector<1xi32>
    %43 = vector.shape_cast %42 : vector<1xi32> to vector<1x1x1xi32>
    %44 = vector.extract %43[0, 0, 0] : i32 from vector<1x1x1xi32>
    %45 = vector.broadcast %44 : i32 to vector<1x1xi32>
    %c0_16 = arith.constant 0 : index
    %c0_17 = arith.constant 0 : index
    %c0_18 = arith.constant 0 : index
    %c0_19 = arith.constant 0 : index
    %46 = vector.load %arg5[%c0_16, %c0_17, %c0_18, %c0_19] : memref<1x1x1x1xi32, #tpu.memory_space<vmem>>, vector<1x1x1x1xi32>
    %47 = vector.shape_cast %46 : vector<1x1x1x1xi32> to vector<1x1xi32>
    %48 = vector.shape_cast %45 : vector<1x1xi32> to vector<1x1x1x1xi32>
    tpu.vector_store %arg5[%c0_16, %c0_17, %c0_18, %c0_19], %48 {strides = array<i32>} : memref<1x1x1x1xi32, #tpu.memory_space<vmem>>, vector<1x1x1x1xi32>,
    return
  }
  func.func @transform_0(%arg0: i32, %arg1: i32) -> (i32, i32, i32) {
    %c0_i32 = arith.constant 0 : i32
    %c0_i32_0 = arith.constant 0 : i32
    return %arg0, %c0_i32, %arg1 : i32, i32, i32
  }
  func.func @transform_1(%arg0: i32, %arg1: i32) -> (i32, i32, i32) {
    %c0_i32 = arith.constant 0 : i32
    %c0_i32_0 = arith.constant 0 : i32
    return %arg0, %c0_i32, %arg1 : i32, i32, i32
  }
  func.func @transform_2(%arg0: i32, %arg1: i32) -> (i32, i32, i32, i32) {
    %c0_i32 = arith.constant 0 : i32
    %c0_i32_0 = arith.constant 0 : i32
    %c0_i32_1 = arith.constant 0 : i32
    return %arg0, %arg1, %c0_i32, %c0_i32_0 : i32, i32, i32, i32
  }
  func.func @transform_3(%arg0: i32, %arg1: i32) -> (i32, i32, i32, i32) {
    %c0_i32 = arith.constant 0 : i32
    %c0_i32_0 = arith.constant 0 : i32
    %c0_i32_1 = arith.constant 0 : i32
    return %arg0, %arg1, %c0_i32, %c0_i32_0 : i32, i32, i32, i32
  }
}

</mosaic_0001>

<llo_original>
// kernel: tpu_custom_call.1
$region0: #{tpu_custom_call.1}
  #allocation0 [shape = 'u32[]', space=smem, size = 0x4, offset = 0x4, fixed_abs, tag = 'smem constant byte address 0x4 - core index']
  #allocation1 [shape = 'u32[144,128]{1,0:T(1,128)}', space=vmem, size = 0x12000, scoped, tag = 'internal scratch']
  %s0 = inlined_call_operand.hbm [shape: f32[2,4,256], index: 0, kind: input, shape index: {}]
  %s1 = inlined_call_operand.hbm [shape: s32[2,1,256], index: 1, kind: input, shape index: {}]
  %s2 = inlined_call_operand.vmem [shape: f32[2,1,1,1], index: 2, kind: output, shape index: {0}]
  %s3 = inlined_call_operand.vmem [shape: s32[2,1,1,1], index: 3, kind: output, shape index: {1}]
  %4 = xla_tuple %s2, %s3
  %s5 = sld [smem:[#allocation0]]
  $region57: #{tpu_custom_call.1} parent=0
    _
  %s7 = ssub.s32 1, %s5
  %s8 = scalar_select 0, %s7, %s5
  $region1: #{tpu_custom_call.1} parent=0
    #allocation2 [shape = 'u8[8192]{0}', space=vmem, size = 0x2000, scoped, tag = 'input window, operand 0']
    #allocation3 [shape = 's32[2]{0}', space=sflag, size = 0x8, scoped, tag = 'scoped memory for tpu_custom_call.1']
    #allocation4 [shape = 'u8[2048]{0}', space=vmem, size = 0x800, scoped, tag = 'input window, operand 1']
    #allocation5 [shape = 's32[2]{0}', space=sflag, size = 0x8, scoped, tag = 'scoped memory for tpu_custom_call.1']
    %9 = vsyncpa [#allocation3], 0
    %s10 = scalar_lea.sflag [#allocation3], 1
    %11 = vsyncpa %s10, 0
    %12 = vsyncpa [#allocation5], 0
    %s13 = scalar_lea.sflag [#allocation5], 1
    %14 = vsyncpa %s13, 0
    loop: start=0, step=1, limit=4
    $region2: #{tpu_custom_call.1} parent=1 // loop_pre_header
      _
    $region3: #{tpu_custom_call.1} parent=1 // loop_header
      %s16 = sphi 0, %s20
      %p17 = scmp.ge.s32.totalorder %s16, 4
      %s23 = sphi 0, %s35
      %s24 = sphi 0, %s31
      %s25 = sphi 0, %s23
      %s26 = sphi 0, %s24
      %s27 = sphi 0, %s25
      %s28 = sphi 0, %s26
      %s40 = sphi 0, %s42
      %s43 = sphi 0, %s40
      %s44 = sphi 0, %s43
      %s60 = sphi 0, %s44
      %s68 = sphi 0, %s70
      %s71 = sphi 0, %s68
      %s72 = sphi 0, %s71
      %s88 = sphi 0, %s72
      %s96 = sphi 0, %s98
      %s99 = sphi 0, %s96
      %s100 = sphi 0, %s99
      %s116 = sphi 0, %s100
      %s124 = sphi 0, %s126
      %s127 = sphi 0, %s124
      %s128 = sphi 0, %s127
      %s144 = sphi 0, %s128
    $region4: #{tpu_custom_call.1} parent=1 // loop_header_branch
      %19 = sbr.rel (%p17) target = $region8
    $region5: #{tpu_custom_call.1} parent=1 // loop_body
      %s21 = ssub.s32 %s16, 1
      %s22 = ssub.s32 %s16, 2
      %s29 = sadd.s32 1, %s24
      %p30 = scmp.ge.s32.totalorder %s29, 1
      %s31 = scalar_select %p30, 0, %s29
      %s32 = sadd.s32 1, %s23
      %s33 = scalar_select %p30, %s32, %s23
      %p34 = scmp.ge.s32.totalorder %s33, 2
      %s35 = scalar_select %p34, 0, %s33
      %s36 = ssub.s32 %s23, %s35
      %s37 = ssub.s32 %s24, %s31
      %s38 = sor.u32 %s36, %s37
      %p39 = scmp.eq.s32.totalorder %s38, 0
      %s41 = sadd.s32 %s40, 1
      %s42 = scalar_select %p39, %s40, %s41
      %p45 = pneg %p39
      %p46 = scmp.eq.s32.totalorder %s16, 1
      %p47 = por %p45, %p46
      %p48 = scmp.ne.s32.totalorder %s40, %s43
      %p49 = scmp.eq.s32.totalorder %s16, 0
      %p50 = por %p48, %p49
      %p51 = scmp.ne.s32.totalorder %s40, %s43
      %p52 = scmp.eq.s32.totalorder %s21, 1
      %p53 = por %p51, %p52
      %p54 = scmp.ne.s32.totalorder %s43, %s44
      %p55 = scmp.eq.s32.totalorder %s21, 0
      %p56 = por %p54, %p55
      %p57 = scmp.ne.s32.totalorder %s43, %s44
      %p58 = scmp.eq.s32.totalorder %s22, 1
      %p59 = por %p57, %p58
      %p61 = scmp.ne.s32.totalorder %s44, %s60
      %p62 = scmp.eq.s32.totalorder %s22, 0
      %p63 = por %p61, %p62
      %s64 = ssub.s32 %s23, %s35
      %s65 = ssub.s32 %s24, %s31
      %s66 = sor.u32 %s64, %s65
      %p67 = scmp.eq.s32.totalorder %s66, 0
      %s69 = sadd.s32 %s68, 1
      %s70 = scalar_select %p67, %s68, %s69
      %p73 = pneg %p67
      %p74 = scmp.eq.s32.totalorder %s16, 1
      %p75 = por %p73, %p74
      %p76 = scmp.ne.s32.totalorder %s68, %s71
      %p77 = scmp.eq.s32.totalorder %s16, 0
      %p78 = por %p76, %p77
      %p79 = scmp.ne.s32.totalorder %s68, %s71
      %p80 = scmp.eq.s32.totalorder %s21, 1
      %p81 = por %p79, %p80
      %p82 = scmp.ne.s32.totalorder %s71, %s72
      %p83 = scmp.eq.s32.totalorder %s21, 0
      %p84 = por %p82, %p83
      %p85 = scmp.ne.s32.totalorder %s71, %s72
      %p86 = scmp.eq.s32.totalorder %s22, 1
      %p87 = por %p85, %p86
      %p89 = scmp.ne.s32.totalorder %s72, %s88
      %p90 = scmp.eq.s32.totalorder %s22, 0
      %p91 = por %p89, %p90
      %s92 = ssub.s32 %s23, %s35
      %s93 = ssub.s32 %s24, %s31
      %s94 = sor.u32 %s92, %s93
      %p95 = scmp.eq.s32.totalorder %s94, 0
      %s97 = sadd.s32 %s96, 1
      %s98 = scalar_select %p95, %s96, %s97
      %p101 = pneg %p95
      %p102 = scmp.eq.s32.totalorder %s16, 1
      %p103 = por %p101, %p102
      %p104 = scmp.ne.s32.totalorder %s96, %s99
      %p105 = scmp.eq.s32.totalorder %s16, 0
      %p106 = por %p104, %p105
      %p107 = scmp.ne.s32.totalorder %s96, %s99
      %p108 = scmp.eq.s32.totalorder %s21, 1
      %p109 = por %p107, %p108
      %p110 = scmp.ne.s32.totalorder %s99, %s100
      %p111 = scmp.eq.s32.totalorder %s21, 0
      %p112 = por %p110, %p111
      %p113 = scmp.ne.s32.totalorder %s99, %s100
      %p114 = scmp.eq.s32.totalorder %s22, 1
      %p115 = por %p113, %p114
      %p117 = scmp.ne.s32.totalorder %s100, %s116
      %p118 = scmp.eq.s32.totalorder %s22, 0
      %p119 = por %p117, %p118
      %s120 = ssub.s32 %s23, %s35
      %s121 = ssub.s32 %s24, %s31
      %s122 = sor.u32 %s120, %s121
      %p123 = scmp.eq.s32.totalorder %s122, 0
      %s125 = sadd.s32 %s124, 1
      %s126 = scalar_select %p123, %s124, %s125
      %p129 = pneg %p123
      %p130 = scmp.eq.s32.totalorder %s16, 1
      %p131 = por %p129, %p130
      %p132 = scmp.ne.s32.totalorder %s124, %s127
      %p133 = scmp.eq.s32.totalorder %s16, 0
      %p134 = por %p132, %p133
      %p135 = scmp.ne.s32.totalorder %s124, %s127
      %p136 = scmp.eq.s32.totalorder %s21, 1
      %p137 = por %p135, %p136
      %p138 = scmp.ne.s32.totalorder %s127, %s128
      %p139 = scmp.eq.s32.totalorder %s21, 0
      %p140 = por %p138, %p139
      %p141 = scmp.ne.s32.totalorder %s127, %s128
      %p142 = scmp.eq.s32.totalorder %s22, 1
      %p143 = por %p141, %p142
      %p145 = scmp.ne.s32.totalorder %s128, %s144
      %p146 = scmp.eq.s32.totalorder %s22, 0
      %p147 = por %p145, %p146
      %p148 = scmp.le.s32.totalorder 1, %s16
      %p149 = scmp.lt.s32.totalorder %s16, 3
      %p150 = pnand %p148, %p149
      %p151 = pneg %p150
      // Predicated region
      $region9: #{tpu_custom_call.1} parent=5 // pred_check
        _
      $region10: #{tpu_custom_call.1} parent=5 // pred_check_branch
        %153 = sbr.rel (%p150) target = $region12
      $region11: #{tpu_custom_call.1} parent=5 // pred_region
        %s154 = ssub.s32 %s16, 1
      $region12: #{tpu_custom_call.1} parent=5 // pred_fallthru
        _
      %p155 = scmp.lt.s32.totalorder %s16, 2
      // Predicated region
      $region13: #{tpu_custom_call.1} parent=5 // pred_check
        %p156 = pneg %p155
      $region14: #{tpu_custom_call.1} parent=5 // pred_check_branch
        %158 = sbr.rel (%p156) target = $region16
      $region15: #{tpu_custom_call.1} parent=5 // pred_region
        // Predicated region
        $region17: #{tpu_custom_call.1} parent=15 // pred_check
          %p159 = pneg %p50
        $region18: #{tpu_custom_call.1} parent=15 // pred_check_branch
          %161 = sbr.rel (%p159) target = $region20
        $region19: #{tpu_custom_call.1} parent=15 // pred_region
          %s162 = sand.u32 %s40, 1
          %s163 = scalar_lea.sflag [#allocation3], %s162
          %s164 = sand.u32 %s40, 1
          %s165 = smul.addr %s164, 8
          %s166 = scalar_lea.vmem [#allocation2], %s165
          %s167 = smul.u32 2, %s24
          %s169 = ssub.s32 128, 128
          %170 = vsyncadd %s163, %s169
          %s171 = smul.addr %s23, 2
          %s172 = sadd.s32 %s167, %s171
          %s173 = smul.addr %s172, 64
          %s174 = scalar_lea.hbm %s0, %s173
          %s176 = sshll.u32 %s166, 4
          %s177 = int_to_ptr.vmem [resolvable:$true] %s176
          %179 = dma.hbm_to_vmem [thread:$0]  %s174, 128, %s177, %s163
        $region20: #{tpu_custom_call.1} parent=15 // pred_fallthru
          _
        // Predicated region
        $region21: #{tpu_custom_call.1} parent=15 // pred_check
          %p180 = pneg %p78
        $region22: #{tpu_custom_call.1} parent=15 // pred_check_branch
          %182 = sbr.rel (%p180) target = $region24
        $region23: #{tpu_custom_call.1} parent=15 // pred_region
          %s183 = sand.u32 %s68, 1
          %s184 = scalar_lea.sflag [#allocation5], %s183
          %s185 = sand.u32 %s68, 1
          %s186 = smul.addr %s185, 2
          %s187 = scalar_lea.vmem [#allocation4], %s186
          %s188 = smul.u32 2, %s24
          %s190 = ssub.s32 32, 32
          %191 = vsyncadd %s184, %s190
          %s192 = smul.addr %s23, 2
          %s193 = sadd.s32 %s188, %s192
          %s194 = smul.addr %s193, 16
          %s195 = scalar_lea.hbm %s1, %s194
          %s197 = sshll.u32 %s187, 4
          %s198 = int_to_ptr.vmem [resolvable:$true] %s197
          %200 = dma.hbm_to_vmem [thread:$0]  %s195, 32, %s198, %s184
        $region24: #{tpu_custom_call.1} parent=15 // pred_fallthru
          _
      $region16: #{tpu_custom_call.1} parent=5 // pred_fallthru
        _
      %p201 = scmp.le.s32.totalorder 1, %s16
      %p202 = scmp.lt.s32.totalorder %s16, 3
      %p203 = pnand %p201, %p202
      %p204 = pneg %p203
      // Predicated region
      $region25: #{tpu_custom_call.1} parent=5 // pred_check
        _
      $region26: #{tpu_custom_call.1} parent=5 // pred_check_branch
        %206 = sbr.rel (%p203) target = $region28
      $region27: #{tpu_custom_call.1} parent=5 // pred_region
        %s207 = ssub.s32 %s16, 1
        %s208 = sand.u32 %s43, 1
        %s209 = scalar_lea.sflag [#allocation3], %s208
        %s210 = sand.u32 %s43, 1
        %s211 = smul.addr %s210, 8
        %s212 = scalar_lea.vmem [#allocation2], %s211
        // Predicated region
        $region29: #{tpu_custom_call.1} parent=27 // pred_check
          %p213 = pneg %p56
        $region30: #{tpu_custom_call.1} parent=27 // pred_check_branch
          %215 = sbr.rel (%p213) target = $region32
        $region31: #{tpu_custom_call.1} parent=27 // pred_region
          %216 = dma.done %s209, 128
        $region32: #{tpu_custom_call.1} parent=27 // pred_fallthru
          _
        %s217 = sand.u32 %s71, 1
        %s218 = scalar_lea.sflag [#allocation5], %s217
        %s219 = sand.u32 %s71, 1
        %s220 = smul.addr %s219, 2
        %s221 = scalar_lea.vmem [#allocation4], %s220
        // Predicated region
        $region33: #{tpu_custom_call.1} parent=27 // pred_check
          %p222 = pneg %p84
        $region34: #{tpu_custom_call.1} parent=27 // pred_check_branch
          %224 = sbr.rel (%p222) target = $region36
        $region35: #{tpu_custom_call.1} parent=27 // pred_region
          %225 = dma.done %s218, 32
        $region36: #{tpu_custom_call.1} parent=27 // pred_fallthru
          _
        %s226 = sand.u32 %s43, 1
        %s227 = scalar_lea.sflag [#allocation3], %s226
        %s228 = sand.u32 %s43, 1
        %s229 = smul.addr %s228, 8
        %s230 = scalar_lea.vmem [#allocation2], %s229
        %p231 = pneg %p56
        %p232 = pneg %p53
        %s233 = sand.u32 %s71, 1
        %s234 = scalar_lea.sflag [#allocation5], %s233
        %s235 = sand.u32 %s71, 1
        %s236 = smul.addr %s235, 2
        %s237 = scalar_lea.vmem [#allocation4], %s236
        %p238 = pneg %p84
        %p239 = pneg %p81
        %p240 = pneg %p112
        %p241 = pneg %p109
        %p242 = scmp.lt.s32.totalorder %s25, 1
        %s243 = scalar_select %p242, %s25, 1
        %p244 = scmp.lt.s32.totalorder %s26, 0
        %s245 = scalar_select %p244, %s26, 0
        %s246 = sadd.s32 %s245, %s243
        %s247 = scalar_lea.vmem %s2, %s246
        %p248 = pneg %p140
        %p249 = pneg %p137
        %p250 = scmp.lt.s32.totalorder %s25, 1
        %s251 = scalar_select %p250, %s25, 1
        %p252 = scmp.lt.s32.totalorder %s26, 0
        %s253 = scalar_select %p252, %s26, 0
        %s254 = sadd.s32 %s253, %s251
        %s255 = scalar_lea.vmem %s3, %s254
        %s256 = smul.u32 2, %s26
        %s257 = smul.u32 2, %s26
        %p258 = scmp.lt.s32.totalorder %s25, 1
        %s259 = scalar_select %p258, %s25, 1
        %p260 = scmp.lt.s32.totalorder %s26, 0
        %s261 = scalar_select %p260, %s26, 0
        %s262 = sadd.s32 %s261, %s259
        %s263 = scalar_lea.vmem %s2, %s262
        %p264 = scmp.lt.s32.totalorder %s25, 1
        %s265 = scalar_select %p264, %s25, 1
        %p266 = scmp.lt.s32.totalorder %s26, 0
        %s267 = scalar_select %p266, %s26, 0
        %s268 = sadd.s32 %s267, %s265
        %s269 = scalar_lea.vmem %s3, %s268
        %v270 = vld [vmem:[%s212] sm:$0xff]
        %v271 = vld [vmem:[%s221] sm:$0x3]
        %v273 = vcombine.high %v270, %v270
        %vm275 = vcmask 1043456
        %v276 = vsel %vm275, %v270, -inf
        %v277 = vrot.slane %v276, 4
        %v278 = vmax.f32 %v276, %v277
        %v279 = vrot.slane %v278, 2
        %v280 = vmax.f32 %v278, %v279
        %v281 = vrot.slane %v280, 1
        %v282 = vmax.f32 %v280, %v281
        %v283 = vsel %vm275, %v273, -inf
        %v284 = vrot.slane %v283, 4
        %v285 = vmax.f32 %v283, %v284
        %v286 = vrot.slane %v285, 2
        %v287 = vmax.f32 %v285, %v286
        %v288 = vrot.slane %v287, 1
        %v289 = vmax.f32 %v287, %v288
        %v292 = vcombine.low %v282, %v289
        %v294 = vsub.f32 %v270, %v292
        %v295 = vmul.f32 %v294, 1.442695
        %v296 = vpow.pop %v295
        %v298 = vcombine.high %v296, %v296
        %v300 = vsel %vm275, %v296, 0.0
        %v301 = vrot.slane %v300, 4
        %v302 = vadd.f32 %v300, %v301
        %v303 = vrot.slane %v302, 2
        %v304 = vadd.f32 %v302, %v303
        %v305 = vrot.slane %v304, 1
        %v306 = vadd.f32 %v304, %v305
        %v307 = vsel %vm275, %v298, 0.0
        %v308 = vrot.slane %v307, 4
        %v309 = vadd.f32 %v307, %v308
        %v310 = vrot.slane %v309, 2
        %v311 = vadd.f32 %v309, %v310
        %v312 = vrot.slane %v311, 1
        %v313 = vadd.f32 %v311, %v312
        %v314 = vlog2.pop %v306
        %v315 = vmul.f32 %v314, 0.6931472
        %v316 = vlog2.pop %v313
        %v317 = vmul.f32 %v316, 0.6931472
        %v318 = vadd.f32 %v315, %v282
        %v319 = vadd.f32 %v317, %v289
        %v320 = vlaneseq
        %v321 = vshrl.u32 %v320, 7
        %v322 = vlaneseq
        %v323 = vshrl.u32 %v322, 7
        %v324 = vsub.s32 0, %v323
        %v325 = vrot.slane %v271, %v324
        %v326 = vlaneseq
        %v327 = vshrl.u32 %v326, 7
        %v328 = vsub.s32 1, %v327
        %v329 = vrot.slane %v271, %v328
        %vm330 = vcmp.eq.s32.totalorder %v321, %v325
        %vm331 = vcmp.eq.s32.totalorder %v321, %v329
        %v332 = vsel %vm330, %v270, 0.0
        %v333 = vsel %vm331, %v273, 0.0
        %v334 = vsel %vm275, %v332, 0.0
        %v335 = vrot.slane %v334, 4
        %v336 = vadd.f32 %v334, %v335
        %v337 = vrot.slane %v336, 2
        %v338 = vadd.f32 %v336, %v337
        %v339 = vrot.slane %v338, 1
        %v340 = vadd.f32 %v338, %v339
        %v341 = vsel %vm275, %v333, 0.0
        %v342 = vrot.slane %v341, 4
        %v343 = vadd.f32 %v341, %v342
        %v344 = vrot.slane %v343, 2
        %v345 = vadd.f32 %v343, %v344
        %v346 = vrot.slane %v345, 1
        %v347 = vadd.f32 %v345, %v346
        %v348 = vlaneseq
        %v349 = vand.u32 %v348, 127
        %v350 = vadd.s32 %v349, 128
        %s351 = smul.u32 %s26, 256
        %v352 = vstv %s351
        %v353 = vadd.s32 %v349, %v352
        %v354 = vadd.s32 %v350, %v352
        %vm355 = vcmp.ne.s32.totalorder %v271, 255
        %vm356 = vcmp.lt.s32.totalorder %v353, 256
        %vm357 = vcmp.lt.s32.totalorder %v354, 256
        %v358 = vsel %vm356, 1, 0
        %v359 = vsel %vm357, 1, 0
        %v360 = vcombine.low %v358, %v359
        %v362 = vunpack.c.l.s4 1966171168
        %v363 = vunpack.c.0.s8 %v362
        %v364 = vlaneseq
        %v365 = vshrl.u32 %v364, 7
        %v366 = vsub.s32 %v363, %v365
        %v367 = vrot.slane %v360, %v366
        %v369 = vunpack.c.l.s4 1966171168
        %v370 = vunpack.c.0.s8 %v369
        %v371 = vlaneseq
        %v372 = vshrl.u32 %v371, 7
        %v373 = vsub.s32 %v370, %v372
        %v374 = vrot.slane %v367, %v373
        %vm375 = vcmp.ne.s32.totalorder %v374, 0
        %vm376 = vmand %vm355, %vm375
        %v377 = vsub.f32 %v318, %v340
        %v378 = vsub.f32 %v319, %v347
        %v381 = vcombine.low %v377, %v378
        %v383 = vunpack.c.l.s4 1966171168
        %v384 = vunpack.c.0.s8 %v383
        %v385 = vlaneseq
        %v386 = vshrl.u32 %v385, 7
        %v387 = vsub.s32 %v384, %v386
        %v388 = vrot.slane %v381, %v387
        %v390 = vunpack.c.l.s4 1966171168
        %v391 = vunpack.c.0.s8 %v390
        %v392 = vlaneseq
        %v393 = vshrl.u32 %v392, 7
        %v394 = vsub.s32 %v391, %v393
        %v395 = vrot.slane %v388, %v394
        %v397 = vsel %vm376, %v395, 0.0
        %v399 = vlaneseq
        %v400 = vshrl.u32 %v399, 7
        %v401 = vsub.s32 0, %v400
        %v402 = vrot.slane %v397, %v401
        %v403 = vlaneseq
        %v404 = vshrl.u32 %v403, 7
        %v405 = vsub.s32 1, %v404
        %v406 = vrot.slane %v397, %v405
        %vm409 = vcmask 1040384
        %v410 = vsel %vm409, %v402, 0.0
        %v411 = vsel %vm409, %v406, 0.0
        %v412 = vadd.f32 %v410, %v411
        %413 = vadd.xlane.f32.xlu0 %v412
        %v414 = vpop.xlane.xlu0 %413
        %v415 = vrot.slane %v414, 4
        %v416 = vadd.f32 %v414, %v415
        %v417 = vrot.slane %v416, 2
        %v418 = vadd.f32 %v416, %v417
        %v419 = vrot.slane %v418, 1
        %v420 = vadd.f32 %v418, %v419
        %s421 = vtos %v420
        %v422 = vstv %s421
        %vm423 = vcmask 0
        %424 = vst.msk [vmem:[%s263] sm:$0x1] %vm423, %v422
        %v425 = vsel %vm376, 1, 0
        %v426 = vlaneseq
        %v427 = vshrl.u32 %v426, 7
        %v428 = vsub.s32 0, %v427
        %v429 = vrot.slane %v425, %v428
        %v430 = vlaneseq
        %v431 = vshrl.u32 %v430, 7
        %v432 = vsub.s32 1, %v431
        %v433 = vrot.slane %v425, %v432
        %v434 = vsel %vm409, %v429, 0
        %v435 = vsel %vm409, %v433, 0
        %v436 = vadd.s32 %v434, %v435
        %v437 = vand.u32 %v436, 65535
        %v438 = vshrl.u32 %v436, 16
        %v439 = vcvt.s32.f32 %v437
        %v440 = vcvt.s32.f32 %v438
        %441 = vadd.xlane.f32.xlu0 %v439
        %v442 = vpop.xlane.xlu0 %441
        %443 = vadd.xlane.f32.xlu0 %v440
        %v444 = vpop.xlane.xlu0 %443
        %v445 = vcvt.f32.s32 %v442
        %v446 = vcvt.f32.s32 %v444
        %v447 = vshll.u32 %v446, 16
        %v448 = vadd.s32 %v447, %v445
        %v449 = vrot.slane %v448, 4
        %v450 = vadd.s32 %v448, %v449
        %v451 = vrot.slane %v450, 2
        %v452 = vadd.s32 %v450, %v451
        %v453 = vrot.slane %v452, 1
        %v454 = vadd.s32 %v452, %v453
        %s455 = vtos %v454
        %v456 = vstv %s455
        %457 = vst.msk [vmem:[%s269] sm:$0x1] %vm423, %v456
        %p458 = scmp.lt.s32.totalorder %s25, 1
        %s459 = scalar_select %p458, %s25, 1
        %p460 = scmp.lt.s32.totalorder %s26, 0
        %s461 = scalar_select %p460, %s26, 0
        %s462 = sadd.s32 %s461, %s459
        %s463 = scalar_lea.vmem %s2, %s462
        %p464 = scmp.lt.s32.totalorder %s25, 1
        %s465 = scalar_select %p464, %s25, 1
        %p466 = scmp.lt.s32.totalorder %s26, 0
        %s467 = scalar_select %p466, %s26, 0
        %s468 = sadd.s32 %s467, %s465
        %s469 = scalar_lea.vmem %s3, %s468
        // Predicated region
        $region37: #{tpu_custom_call.1} parent=27 // pred_check
          %p470 = pneg %p109
        $region38: #{tpu_custom_call.1} parent=27 // pred_check_branch
          %472 = sbr.rel (%p470) target = $region40
        $region39: #{tpu_custom_call.1} parent=27 // pred_region
          _
        $region40: #{tpu_custom_call.1} parent=27 // pred_fallthru
          _
        // Predicated region
        $region41: #{tpu_custom_call.1} parent=27 // pred_check
          %p473 = pneg %p137
        $region42: #{tpu_custom_call.1} parent=27 // pred_check_branch
          %475 = sbr.rel (%p473) target = $region44
        $region43: #{tpu_custom_call.1} parent=27 // pred_region
          _
        $region44: #{tpu_custom_call.1} parent=27 // pred_fallthru
          _
      $region28: #{tpu_custom_call.1} parent=5 // pred_fallthru
        _
      %p476 = scmp.le.s32.totalorder 2, %s16
      // Predicated region
      $region45: #{tpu_custom_call.1} parent=5 // pred_check
        %p477 = pneg %p476
      $region46: #{tpu_custom_call.1} parent=5 // pred_check_branch
        %479 = sbr.rel (%p477) target = $region48
      $region47: #{tpu_custom_call.1} parent=5 // pred_region
        %s480 = ssub.s32 %s16, 2
        // Predicated region
        $region49: #{tpu_custom_call.1} parent=47 // pred_check
          %p481 = pneg %p115
        $region50: #{tpu_custom_call.1} parent=47 // pred_check_branch
          %483 = sbr.rel (%p481) target = $region52
        $region51: #{tpu_custom_call.1} parent=47 // pred_region
          %p484 = scmp.lt.s32.totalorder %s27, 1
          %s485 = scalar_select %p484, %s27, 1
          %p486 = scmp.lt.s32.totalorder %s28, 0
          %s487 = scalar_select %p486, %s28, 0
          %s488 = sadd.s32 %s487, %s485
          %s489 = scalar_lea.vmem %s2, %s488
        $region52: #{tpu_custom_call.1} parent=47 // pred_fallthru
          _
        // Predicated region
        $region53: #{tpu_custom_call.1} parent=47 // pred_check
          %p490 = pneg %p143
        $region54: #{tpu_custom_call.1} parent=47 // pred_check_branch
          %492 = sbr.rel (%p490) target = $region56
        $region55: #{tpu_custom_call.1} parent=47 // pred_region
          %p493 = scmp.lt.s32.totalorder %s27, 1
          %s494 = scalar_select %p493, %s27, 1
          %p495 = scmp.lt.s32.totalorder %s28, 0
          %s496 = scalar_select %p495, %s28, 0
          %s497 = sadd.s32 %s496, %s494
          %s498 = scalar_lea.vmem %s3, %s497
        $region56: #{tpu_custom_call.1} parent=47 // pred_fallthru
          _
      $region48: #{tpu_custom_call.1} parent=5 // pred_fallthru
        _
    $region6: #{tpu_custom_call.1} parent=1 // loop_footer
      %s20 = sadd.s32 1, %s16
    $region7: #{tpu_custom_call.1} parent=1 // loop_footer_branch
      %15 = sbr.rel target = $region3
    $region8: #{tpu_custom_call.1} parent=1 // loop_exit
      _
    %499 = vsyncpa [#allocation3], 1
    %s500 = scalar_lea.sflag [#allocation3], 1
    %501 = vsyncpa %s500, 1
    %502 = vsyncpa [#allocation5], 1
    %s503 = scalar_lea.sflag [#allocation5], 1
    %504 = vsyncpa %s503, 1

</llo_original>
